<compile_context>
chip_gen: v7x
topology: tpu7x:2x2x1
jax: 0.10.0
libtpu: 0.0.40
codegen_flags: <defaults>
</compile_context>

<pallas_src>
import functools

import numpy as np
import jax
import jax.numpy as jnp
from jax import lax
from jax.experimental import pallas as pl
from jax.experimental.pallas import tpu as pltpu


def _dft2_matrix(h, w):
    """f32 [Re(M) | Im(M)] for M = kron(F_h, F_w), shape (h*w, 2*h*w).

    For a row-major-flattened real image x (length h*w), X = x @ M is the
    row-major-flattened 2-D DFT (M is symmetric, so no transpose needed).
    """
    jh = np.arange(h)
    jw = np.arange(w)
    f_h = np.exp(-2j * np.pi * np.outer(jh, jh) / h)
    f_w = np.exp(-2j * np.pi * np.outer(jw, jw) / w)
    m = np.kron(f_h, f_w)                                    # (h*w, h*w) complex128
    m_ri = np.concatenate([m.real, m.imag], axis=1)          # (h*w, 2*h*w)
    return jnp.asarray(m_ri, dtype=jnp.float32)


def _phase_sqerr_kernel(x_ref, y_ref, m_ref, acc_ref, *, tb, hw, ch, n_valid,
                        needs_mask):
    """One grid step: TB images of x and y -> acc += (phase_x - phase_y)**2.

    acc_ref is the same (TB, H*W) block for every step of the trailing
    ("arbitrary") axis, so it stays resident in VMEM as a lane-dense
    elementwise accumulator: no per-step cross-lane reduction.
    """
    c = pl.program_id(0)
    k = pl.program_id(1)

    @pl.when(k == 0)
    def _():
        acc_ref[...] = jnp.zeros_like(acc_ref)

    # Fused DFT: one (2*TB, HW) @ (HW, 2*HW) MXU call covers re/im of x and y.
    lhs = jnp.concatenate(
        [x_ref[...].astype(jnp.float32), y_ref[...].astype(jnp.float32)],
        axis=0)                                              # (2*TB, HW) f32
    res = jnp.dot(lhs, m_ref[...],
                  preferred_element_type=jnp.float32)        # (2*TB, 2*HW)

    # torch.angle == atan2(imag, real); all slices sit on lane/sublane tiles.
    phase = jnp.arctan2(res[:, hw:], res[:, :hw])            # (2*TB, HW)
    d = phase[:tb, :] - phase[tb:, :]                        # (TB, HW)
    sq = d * d

    if needs_mask:
        # Explicitly zero padded rows (static no-op when batch % TB == 0).
        row = (c * ch + k) * tb + lax.broadcasted_iota(jnp.int32, (tb, 1), 0)
        sq = jnp.where(row < n_valid, sq, 0.0)

    acc_ref[...] += sq


def _num_tensorcores():
    # 2 TensorCores per chip only on v7x-class devices; v5e/v6e have 1.
    try:
        kind = jax.devices()[0].device_kind.lower()
        return 2 if "v7" in kind else 1
    except Exception:  # pragma: no cover - defensive
        return 1


def _round_up(v, m):
    return ((v + m - 1) // m) * m


def frequency_domain_phase_consistency_loss(x, y, *, images_per_step=128,
                                            core_splits=None):
    """x, y: (B, C, H, W). Returns scalar f32 phase-MSE loss."""
    B, C, H, W = x.shape
    n, hw = B * C, H * W

    # Images travel as bf16 (halves HBM->VMEM DMA for the dominant operands);
    # the DFT runs against f32 twiddles with f32 accumulation.
    xs = x.reshape(n, hw).astype(jnp.bfloat16)
    ys = y.reshape(n, hw).astype(jnp.bfloat16)

    # TB images per grid step (multiple of 8 for sublane alignment), collapsed
    # to the real batch when it is smaller so small batches run in one step.
    tb = min(_round_up(max(images_per_step, 8), 8), _round_up(n, 8))

    # Use the second TensorCore (v7x) only when each core slot gets at least
    # two full chunks; on 1-TC v5e/v6e this is always 1.
    if core_splits is None:
        core_splits = min(_num_tensorcores(), max(1, n // (2 * tb)))
    core_splits = max(1, int(core_splits))

    per_core = -(-n // core_splits)
    ch = max(1, -(-per_core // tb))                  # chunks per core slot
    n_pad = core_splits * ch * tb

    if n_pad != n:
        # At most core_splits*tb - 1 rows; XLA fuses this with the bf16 cast
        # above (which already materializes the inputs), so no extra HBM pass.
        # Padded rows are also masked inside the kernel.
        pad = jnp.zeros((n_pad - n, hw), jnp.bfloat16)
        xs = jnp.concatenate([xs, pad], axis=0)
        ys = jnp.concatenate([ys, pad], axis=0)

    m_ri = _dft2_matrix(H, W)                        # (hw, 2*hw) f32 twiddles

    img_spec = pl.BlockSpec((tb, hw), lambda c, k: (c * ch + k, 0))
    # Constant index_map: the twiddle block is fetched once and reused (Pallas
    # skips re-DMA when the block index does not change).
    # TODO(synk): single-buffer it (pipeline_mode=pl.Buffered(1)) and/or go to
    # the separable two-stage DFT once H*W grows (VMEM, especially on v7x).
    mat_spec = pl.BlockSpec((hw, 2 * hw), lambda c, k: (0, 0))
    acc_spec = pl.BlockSpec((tb, hw), lambda c, k: (c, 0))

    steps = core_splits * ch
    cost = pl.CostEstimate(
        flops=8 * steps * tb * hw * hw,              # (2*tb,hw)@(hw,2*hw)/step
        transcendentals=4 * steps * tb * hw,         # atan2 ~ divide + arctan, x & y
        bytes_accessed=(2 * steps * tb * hw * 2      # x, y blocks (bf16)
                        + hw * 2 * hw * 4            # f32 twiddle matrix
                        + core_splits * tb * hw * 4))  # accumulator writeback

    kernel = functools.partial(_phase_sqerr_kernel, tb=tb, hw=hw, ch=ch,
                               n_valid=n, needs_mask=(n_pad != n))

    acc = pl.pallas_call(
        kernel,
        out_shape=jax.ShapeDtypeStruct((core_splits * tb, hw), jnp.float32),
        grid=(core_splits, ch),
        in_specs=[img_spec, img_spec, mat_spec],
        out_specs=acc_spec,
        compiler_params=pltpu.CompilerParams(
            dimension_semantics=("parallel", "arbitrary"),
            vmem_limit_bytes=32 * 1024 * 1024),
        cost_estimate=cost,
    )(xs, ys, m_ri)

    # Single scalar reduction + mean over the TRUE element count (padded rows
    # were masked to zero in-kernel); matches nn.MSELoss(reduction='mean').
    # TODO(synk): optional in-kernel finalize to a per-core scalar would also
    # remove this follow-up reduction dispatch for microsecond-scale use.
    return jnp.sum(acc) / (B * C * H * W)


if __name__ == "__main__":
    key = jax.random.PRNGKey(0)
    kx, ky = jax.random.split(key)
    B, C, H, W = 2, 4, 16, 16
    x = jax.random.normal(kx, (B, C, H, W), dtype=jnp.float32)
    y = jax.random.normal(ky, (B, C, H, W), dtype=jnp.float32)

    loss = jax.block_until_ready(frequency_domain_phase_consistency_loss(x, y))

    # Sanity check against a plain-JAX reference.  FFT bins near the +-pi
    # branch cut (or with tiny magnitude) have numerically unstable phase
    # (2*pi flips), and the kernel consumes bf16 images, so bit-exact
    # agreement with the f32 FFT reference is not expected; f32 twiddles keep
    # the error comfortably inside this tolerance.
    ref = jnp.mean((jnp.angle(jnp.fft.fft2(x)) - jnp.angle(jnp.fft.fft2(y))) ** 2)
    assert bool(jnp.isfinite(loss))
    assert bool(jnp.allclose(loss, ref, rtol=0.0, atol=1.0)), (loss, ref)

    print("KERNEL_OK")
</pallas_src>

<mosaic_0001>
module attributes {stable_mosaic.version = 11 : i64} {
  func.func @_phase_sqerr_kernel(%arg0: i32, %arg1: i32, %arg2: memref<8x256xbf16, #tpu.memory_space<vmem>>, %arg3: memref<8x256xbf16, #tpu.memory_space<vmem>>, %arg4: memref<256x512xf32, #tpu.memory_space<vmem>>, %arg5: memref<8x256xf32, #tpu.memory_space<vmem>>) attributes {dimension_semantics = [#tpu.dimension_semantics<parallel>, #tpu.dimension_semantics<arbitrary>], iteration_bounds = array<i64: 1, 1>, scalar_prefetch = 0 : i64, scratch_operands = 0 : i64, tpu.core_type = #tpu.core_type<tc>, window_params = [{transform_indices = @transform_0, window_bounds = array<i64: 8, 256>}, {transform_indices = @transform_1, window_bounds = array<i64: 8, 256>}, {pipeline_mode = #tpu.pipeline_mode<synchronous>, transform_indices = @transform_2, window_bounds = array<i64: 256, 512>}, {transform_indices = @transform_3, window_bounds = array<i64: 8, 256>}]} {
    %c0_i32 = arith.constant 0 : i32
    %0 = arith.cmpi eq, %arg1, %c0_i32 : i32
    %1 = arith.extui %0 : i1 to i32
    %c0_i32_0 = arith.constant 0 : i32
    %2 = arith.cmpi ne, %1, %c0_i32_0 : i32
    scf.if %2 {
      %cst_10 = arith.constant 0.000000e+00 : f32
      %20 = vector.broadcast %cst_10 : f32 to vector<8x256xf32>
      %c0_11 = arith.constant 0 : index
      %c0_12 = arith.constant 0 : index
      %21 = vector.load %arg5[%c0_11, %c0_12] : memref<8x256xf32, #tpu.memory_space<vmem>>, vector<8x256xf32>
      tpu.vector_store %arg5[%c0_11, %c0_12], %20 {strides = array<i32>} : memref<8x256xf32, #tpu.memory_space<vmem>>, vector<8x256xf32>,
    } else {
    }
    %c0 = arith.constant 0 : index
    %c0_1 = arith.constant 0 : index
    %3 = vector.load %arg2[%c0, %c0_1] : memref<8x256xbf16, #tpu.memory_space<vmem>>, vector<8x256xbf16>
    %4 = arith.extf %3 : vector<8x256xbf16> to vector<8x256xf32>
    %c0_2 = arith.constant 0 : index
    %c0_3 = arith.constant 0 : index
    %5 = vector.load %arg3[%c0_2, %c0_3] : memref<8x256xbf16, #tpu.memory_space<vmem>>, vector<8x256xbf16>
    %6 = arith.extf %5 : vector<8x256xbf16> to vector<8x256xf32>
    %7 = tpu.concatenate %4, %6 in 0 : vector<8x256xf32>, vector<8x256xf32> -> vector<16x256xf32>
    %c0_4 = arith.constant 0 : index
    %c0_5 = arith.constant 0 : index
    %8 = vector.load %arg4[%c0_4, %c0_5] : memref<256x512xf32, #tpu.memory_space<vmem>>, vector<256x512xf32>
    %cst = arith.constant dense<0.000000e+00> : vector<16x512xf32>
    %9 = tpu.matmul %7, %8, %cst {dimension_numbers = #tpu.dot_dimension_numbers<[1], [0], [0], [1], [0, 0, 1, 1], [], []>} : vector<16x256xf32>, vector<256x512xf32>, vector<16x512xf32> -> vector<16x512xf32>
    %10 = vector.extract_strided_slice %9 {offsets = [0, 256], sizes = [16, 256], strides = [1, 1]} : vector<16x512xf32> to vector<16x256xf32>
    %11 = vector.extract_strided_slice %9 {offsets = [0, 0], sizes = [16, 256], strides = [1, 1]} : vector<16x512xf32> to vector<16x256xf32>
    %12 = math.atan2 %10, %11 : vector<16x256xf32>
    %13 = vector.extract_strided_slice %12 {offsets = [0, 0], sizes = [8, 256], strides = [1, 1]} : vector<16x256xf32> to vector<8x256xf32>
    %14 = vector.extract_strided_slice %12 {offsets = [8, 0], sizes = [8, 256], strides = [1, 1]} : vector<16x256xf32> to vector<8x256xf32>
    %15 = arith.subf %13, %14 : vector<8x256xf32>
    %16 = arith.mulf %15, %15 : vector<8x256xf32>
    %c0_6 = arith.constant 0 : index
    %c0_7 = arith.constant 0 : index
    %17 = vector.load %arg5[%c0_6, %c0_7] : memref<8x256xf32, #tpu.memory_space<vmem>>, vector<8x256xf32>
    %18 = arith.addf %17, %16 : vector<8x256xf32>
    %c0_8 = arith.constant 0 : index
    %c0_9 = arith.constant 0 : index
    %19 = vector.load %arg5[%c0_8, %c0_9] : memref<8x256xf32, #tpu.memory_space<vmem>>, vector<8x256xf32>
    tpu.vector_store %arg5[%c0_8, %c0_9], %18 {strides = array<i32>} : memref<8x256xf32, #tpu.memory_space<vmem>>, vector<8x256xf32>,
    return
  }
  func.func @transform_0(%arg0: i32, %arg1: i32) -> (i32, i32) {
    %c1_i32 = arith.constant 1 : i32
    %0 = arith.muli %arg0, %c1_i32 : i32
    %1 = arith.addi %0, %arg1 : i32
    %c0_i32 = arith.constant 0 : i32
    %c0_i32_0 = arith.constant 0 : i32
    return %1, %c0_i32 : i32, i32
  }
  func.func @transform_1(%arg0: i32, %arg1: i32) -> (i32, i32) {
    %c1_i32 = arith.constant 1 : i32
    %0 = arith.muli %arg0, %c1_i32 : i32
    %1 = arith.addi %0, %arg1 : i32
    %c0_i32 = arith.constant 0 : i32
    %c0_i32_0 = arith.constant 0 : i32
    return %1, %c0_i32 : i32, i32
  }
  func.func @transform_2(%arg0: i32, %arg1: i32) -> (i32, i32) {
    %c0_i32 = arith.constant 0 : i32
    %c0_i32_0 = arith.constant 0 : i32
    %c0_i32_1 = arith.constant 0 : i32
    return %c0_i32, %c0_i32_0 : i32, i32
  }
  func.func @transform_3(%arg0: i32, %arg1: i32) -> (i32, i32) {
    %c0_i32 = arith.constant 0 : i32
    %c0_i32_0 = arith.constant 0 : i32
    return %arg0, %c0_i32 : i32, i32
  }
}

</mosaic_0001>

<llo_original>
// kernel: tpu_custom_call.1
$region0: #{tpu_custom_call.1}
  #allocation0 [shape = 'u32[]', space=smem, size = 0x4, offset = 0x4, fixed_abs, tag = 'smem constant byte address 0x4 - core index']
  #allocation1 [shape = 'u32[144,128]{1,0:T(1,128)}', space=vmem, size = 0x12000, scoped, tag = 'internal scratch']
  %s0 = inlined_call_operand.hbm [shape: bf16[8,256], index: 0, kind: input, shape index: {}]
  %s1 = inlined_call_operand.hbm [shape: bf16[8,256], index: 1, kind: input, shape index: {}]
  %s2 = inlined_call_operand.hbm [shape: f32[256,512], index: 2, kind: input, shape index: {}]
  %s3 = inlined_call_operand.hbm [shape: f32[8,256], index: 3, kind: output, shape index: {}]
  %s4 = sld [smem:[#allocation0]]
  $region38: #{tpu_custom_call.1} parent=0
    _
  %s6 = ssub.s32 1, %s4
  %s7 = scalar_select 0, %s6, %s4
  $region1: #{tpu_custom_call.1} parent=0
    #allocation2 [shape = 'u8[4096]{0}', space=vmem, size = 0x1000, scoped, tag = 'input window, operand 0, single buffered']
    #allocation3 [shape = 's32[1]{0}', space=sflag, size = 0x4, scoped, tag = 'scoped memory for tpu_custom_call.1']
    #allocation4 [shape = 's32[1]{0}', space=sflag, size = 0x4, scoped, tag = 'scoped memory for tpu_custom_call.1']
    #allocation5 [shape = 'u8[4096]{0}', space=vmem, size = 0x1000, scoped, tag = 'input window, operand 1, single buffered']
    #allocation6 [shape = 's32[1]{0}', space=sflag, size = 0x4, scoped, tag = 'scoped memory for tpu_custom_call.1']
    #allocation7 [shape = 'u8[524288]{0}', space=vmem, size = 0x80000, scoped, tag = 'input window, operand 2, single buffered']
    #allocation8 [shape = 'u8[8192]{0}', space=vmem, size = 0x2000, scoped, tag = 'output window, operand 0, single buffered']
    %8 = vsyncpa [#allocation3], 0
    %9 = vsyncpa [#allocation6], 0
    %10 = vsyncpa [#allocation4], 0
    // Predicated region
    $region2: #{tpu_custom_call.1} parent=1 // pred_check
      _
    $region3: #{tpu_custom_call.1} parent=1 // pred_check_branch
      %12 = sbr.rel (0) target = $region5
    $region4: #{tpu_custom_call.1} parent=1 // pred_region
      %s13 = sadd.s32 0, 0
      %s15 = ssub.s32 128, 128
      %16 = vsyncadd [#allocation3], %s15
      %s17 = smul.addr %s13, 2
      %s18 = smul.addr %s17, 64
      %s19 = scalar_lea.hbm %s0, %s18
      %s21 = sshll.u32 [#allocation2], 4
      %s22 = int_to_ptr.vmem [resolvable:$true] %s21
      %24 = dma.hbm_to_vmem [thread:$0]  %s19, 128, %s22, [#allocation3]
    $region5: #{tpu_custom_call.1} parent=1 // pred_fallthru
      _
    // Predicated region
    $region6: #{tpu_custom_call.1} parent=1 // pred_check
      _
    $region7: #{tpu_custom_call.1} parent=1 // pred_check_branch
      %26 = sbr.rel (0) target = $region9
    $region8: #{tpu_custom_call.1} parent=1 // pred_region
      %s27 = sadd.s32 0, 0
      %s29 = ssub.s32 128, 128
      %30 = vsyncadd [#allocation6], %s29
      %s31 = smul.addr %s27, 2
      %s32 = smul.addr %s31, 64
      %s33 = scalar_lea.hbm %s1, %s32
      %s35 = sshll.u32 [#allocation5], 4
      %s36 = int_to_ptr.vmem [resolvable:$true] %s35
      %38 = dma.hbm_to_vmem [thread:$0]  %s33, 128, %s36, [#allocation6]
    $region9: #{tpu_custom_call.1} parent=1 // pred_fallthru
      _
    // Predicated region
    $region10: #{tpu_custom_call.1} parent=1 // pred_check
      _
    $region11: #{tpu_custom_call.1} parent=1 // pred_check_branch
      %40 = sbr.rel (0) target = $region13
    $region12: #{tpu_custom_call.1} parent=1 // pred_region
      %s42 = ssub.s32 16384, 16384
      %43 = vsyncadd [#allocation6], %s42
      %s44 = sshll.u32 [#allocation7], 4
      %s45 = int_to_ptr.vmem [resolvable:$true] %s44
      %50 = dma.hbm_to_vmem [thread:$0]  %s2, 16384, %s45, [#allocation6], 512, 512, 32
    $region13: #{tpu_custom_call.1} parent=1 // pred_fallthru
      _
    // Predicated region
    $region14: #{tpu_custom_call.1} parent=1 // pred_check
      _
    $region15: #{tpu_custom_call.1} parent=1 // pred_check_branch
      %52 = sbr.rel (0) target = $region17
    $region16: #{tpu_custom_call.1} parent=1 // pred_region
      %53 = dma.done [#allocation3], 128
    $region17: #{tpu_custom_call.1} parent=1 // pred_fallthru
      _
    // Predicated region
    $region18: #{tpu_custom_call.1} parent=1 // pred_check
      _
    $region19: #{tpu_custom_call.1} parent=1 // pred_check_branch
      %55 = sbr.rel (0) target = $region21
    $region20: #{tpu_custom_call.1} parent=1 // pred_region
      %56 = dma.done [#allocation6], 128
    $region21: #{tpu_custom_call.1} parent=1 // pred_fallthru
      _
    // Predicated region
    $region22: #{tpu_custom_call.1} parent=1 // pred_check
      _
    $region23: #{tpu_custom_call.1} parent=1 // pred_check_branch
      %58 = sbr.rel (0) target = $region25
    $region24: #{tpu_custom_call.1} parent=1 // pred_region
      %59 = dma.done [#allocation6], 16384
    $region25: #{tpu_custom_call.1} parent=1 // pred_fallthru
      _
    %s60 = sadd.s32 0, 0
    %s61 = sadd.s32 0, 0
    %p62 = scmp.eq.s32.totalorder 0, 0
    // Predicated region
    $region26: #{tpu_custom_call.1} parent=1 // pred_check
      %p63 = pneg %p62
    $region27: #{tpu_custom_call.1} parent=1 // pred_check_branch
      %65 = sbr.rel (%p63) target = $region29
    $region28: #{tpu_custom_call.1} parent=1 // pred_region
      %66 = vst [vmem:[#allocation8] sm:$0xff] 0.0
      %67 = vst [vmem:[#allocation8 + $0x8] sm:$0xff] 0.0
    $region29: #{tpu_custom_call.1} parent=1 // pred_fallthru
      _
    %v68 = vld [vmem:[#allocation2] sm:$0xff]
    %v69 = vunpack.c.l.bf16 %v68
    %v70 = vunpack.c.h.bf16 %v68
    %v71 = vld [vmem:[#allocation5] sm:$0xff]
    %v72 = vunpack.c.l.bf16 %v71
    %v73 = vunpack.c.h.bf16 %v71
    %v74 = vld [vmem:[#allocation7] sm:$0xff]
    %v75 = vld [vmem:[#allocation7 + $0x8] sm:$0xff]
    %v76 = vld [vmem:[#allocation7 + $0x10] sm:$0xff]
    %v77 = vld [vmem:[#allocation7 + $0x18] sm:$0xff]
    %v78 = vld [vmem:[#allocation7 + $0x20] sm:$0xff]
    %v79 = vld [vmem:[#allocation7 + $0x28] sm:$0xff]
    %v80 = vld [vmem:[#allocation7 + $0x30] sm:$0xff]
    %v81 = vld [vmem:[#allocation7 + $0x38] sm:$0xff]
    %v82 = vld [vmem:[#allocation7 + $0x40] sm:$0xff]
    %v83 = vld [vmem:[#allocation7 + $0x48] sm:$0xff]
    %v84 = vld [vmem:[#allocation7 + $0x50] sm:$0xff]
    %v85 = vld [vmem:[#allocation7 + $0x58] sm:$0xff]
    %v86 = vld [vmem:[#allocation7 + $0x60] sm:$0xff]
    %v87 = vld [vmem:[#allocation7 + $0x68] sm:$0xff]
    %v88 = vld [vmem:[#allocation7 + $0x70] sm:$0xff]
    %v89 = vld [vmem:[#allocation7 + $0x78] sm:$0xff]
    %v90 = vld [vmem:[#allocation7 + $0x80] sm:$0xff]
    %v91 = vld [vmem:[#allocation7 + $0x88] sm:$0xff]
    %v92 = vld [vmem:[#allocation7 + $0x90] sm:$0xff]
    %v93 = vld [vmem:[#allocation7 + $0x98] sm:$0xff]
    %v94 = vld [vmem:[#allocation7 + $0xa0] sm:$0xff]
    %v95 = vld [vmem:[#allocation7 + $0xa8] sm:$0xff]
    %v96 = vld [vmem:[#allocation7 + $0xb0] sm:$0xff]
    %v97 = vld [vmem:[#allocation7 + $0xb8] sm:$0xff]
    %v98 = vld [vmem:[#allocation7 + $0xc0] sm:$0xff]
    %v99 = vld [vmem:[#allocation7 + $0xc8] sm:$0xff]
    %v100 = vld [vmem:[#allocation7 + $0xd0] sm:$0xff]
    %v101 = vld [vmem:[#allocation7 + $0xd8] sm:$0xff]
    %v102 = vld [vmem:[#allocation7 + $0xe0] sm:$0xff]
    %v103 = vld [vmem:[#allocation7 + $0xe8] sm:$0xff]
    %v104 = vld [vmem:[#allocation7 + $0xf0] sm:$0xff]
    %v105 = vld [vmem:[#allocation7 + $0xf8] sm:$0xff]
    %v106 = vld [vmem:[#allocation7 + $0x100] sm:$0xff]
    %v107 = vld [vmem:[#allocation7 + $0x108] sm:$0xff]
    %v108 = vld [vmem:[#allocation7 + $0x110] sm:$0xff]
    %v109 = vld [vmem:[#allocation7 + $0x118] sm:$0xff]
    %v110 = vld [vmem:[#allocation7 + $0x120] sm:$0xff]
    %v111 = vld [vmem:[#allocation7 + $0x128] sm:$0xff]
    %v112 = vld [vmem:[#allocation7 + $0x130] sm:$0xff]
    %v113 = vld [vmem:[#allocation7 + $0x138] sm:$0xff]
    %v114 = vld [vmem:[#allocation7 + $0x140] sm:$0xff]
    %v115 = vld [vmem:[#allocation7 + $0x148] sm:$0xff]
    %v116 = vld [vmem:[#allocation7 + $0x150] sm:$0xff]
    %v117 = vld [vmem:[#allocation7 + $0x158] sm:$0xff]
    %v118 = vld [vmem:[#allocation7 + $0x160] sm:$0xff]
    %v119 = vld [vmem:[#allocation7 + $0x168] sm:$0xff]
    %v120 = vld [vmem:[#allocation7 + $0x170] sm:$0xff]
    %v121 = vld [vmem:[#allocation7 + $0x178] sm:$0xff]
    %v122 = vld [vmem:[#allocation7 + $0x180] sm:$0xff]
    %v123 = vld [vmem:[#allocation7 + $0x188] sm:$0xff]
    %v124 = vld [vmem:[#allocation7 + $0x190] sm:$0xff]
    %v125 = vld [vmem:[#allocation7 + $0x198] sm:$0xff]
    %v126 = vld [vmem:[#allocation7 + $0x1a0] sm:$0xff]
    %v127 = vld [vmem:[#allocation7 + $0x1a8] sm:$0xff]
    %v128 = vld [vmem:[#allocation7 + $0x1b0] sm:$0xff]
    %v129 = vld [vmem:[#allocation7 + $0x1b8] sm:$0xff]
    %v130 = vld [vmem:[#allocation7 + $0x1c0] sm:$0xff]
    %v131 = vld [vmem:[#allocation7 + $0x1c8] sm:$0xff]
    %v132 = vld [vmem:[#allocation7 + $0x1d0] sm:$0xff]
    %v133 = vld [vmem:[#allocation7 + $0x1d8] sm:$0xff]
    %v134 = vld [vmem:[#allocation7 + $0x1e0] sm:$0xff]
    %v135 = vld [vmem:[#allocation7 + $0x1e8] sm:$0xff]
    %v136 = vld [vmem:[#allocation7 + $0x1f0] sm:$0xff]
    %v137 = vld [vmem:[#allocation7 + $0x1f8] sm:$0xff]
    %v138 = vld [vmem:[#allocation7 + $0x200] sm:$0xff]
    %v139 = vld [vmem:[#allocation7 + $0x208] sm:$0xff]
    %v140 = vld [vmem:[#allocation7 + $0x210] sm:$0xff]
    %v141 = vld [vmem:[#allocation7 + $0x218] sm:$0xff]
    %v142 = vld [vmem:[#allocation7 + $0x220] sm:$0xff]
    %v143 = vld [vmem:[#allocation7 + $0x228] sm:$0xff]
    %v144 = vld [vmem:[#allocation7 + $0x230] sm:$0xff]
    %v145 = vld [vmem:[#allocation7 + $0x238] sm:$0xff]
    %v146 = vld [vmem:[#allocation7 + $0x240] sm:$0xff]
    %v147 = vld [vmem:[#allocation7 + $0x248] sm:$0xff]
    %v148 = vld [vmem:[#allocation7 + $0x250] sm:$0xff]
    %v149 = vld [vmem:[#allocation7 + $0x258] sm:$0xff]
    %v150 = vld [vmem:[#allocation7 + $0x260] sm:$0xff]
    %v151 = vld [vmem:[#allocation7 + $0x268] sm:$0xff]
    %v152 = vld [vmem:[#allocation7 + $0x270] sm:$0xff]
    %v153 = vld [vmem:[#allocation7 + $0x278] sm:$0xff]
    %v154 = vld [vmem:[#allocation7 + $0x280] sm:$0xff]
    %v155 = vld [vmem:[#allocation7 + $0x288] sm:$0xff]
    %v156 = vld [vmem:[#allocation7 + $0x290] sm:$0xff]
    %v157 = vld [vmem:[#allocation7 + $0x298] sm:$0xff]
    %v158 = vld [vmem:[#allocation7 + $0x2a0] sm:$0xff]
    %v159 = vld [vmem:[#allocation7 + $0x2a8] sm:$0xff]
    %v160 = vld [vmem:[#allocation7 + $0x2b0] sm:$0xff]
    %v161 = vld [vmem:[#allocation7 + $0x2b8] sm:$0xff]
    %v162 = vld [vmem:[#allocation7 + $0x2c0] sm:$0xff]
    %v163 = vld [vmem:[#allocation7 + $0x2c8] sm:$0xff]
    %v164 = vld [vmem:[#allocation7 + $0x2d0] sm:$0xff]
    %v165 = vld [vmem:[#allocation7 + $0x2d8] sm:$0xff]
    %v166 = vld [vmem:[#allocation7 + $0x2e0] sm:$0xff]
    %v167 = vld [vmem:[#allocation7 + $0x2e8] sm:$0xff]
    %v168 = vld [vmem:[#allocation7 + $0x2f0] sm:$0xff]
    %v169 = vld [vmem:[#allocation7 + $0x2f8] sm:$0xff]
    %v170 = vld [vmem:[#allocation7 + $0x300] sm:$0xff]
    %v171 = vld [vmem:[#allocation7 + $0x308] sm:$0xff]
    %v172 = vld [vmem:[#allocation7 + $0x310] sm:$0xff]
    %v173 = vld [vmem:[#allocation7 + $0x318] sm:$0xff]
    %v174 = vld [vmem:[#allocation7 + $0x320] sm:$0xff]
    %v175 = vld [vmem:[#allocation7 + $0x328] sm:$0xff]
    %v176 = vld [vmem:[#allocation7 + $0x330] sm:$0xff]
    %v177 = vld [vmem:[#allocation7 + $0x338] sm:$0xff]
    %v178 = vld [vmem:[#allocation7 + $0x340] sm:$0xff]
    %v179 = vld [vmem:[#allocation7 + $0x348] sm:$0xff]
    %v180 = vld [vmem:[#allocation7 + $0x350] sm:$0xff]
    %v181 = vld [vmem:[#allocation7 + $0x358] sm:$0xff]
    %v182 = vld [vmem:[#allocation7 + $0x360] sm:$0xff]
    %v183 = vld [vmem:[#allocation7 + $0x368] sm:$0xff]
    %v184 = vld [vmem:[#allocation7 + $0x370] sm:$0xff]
    %v185 = vld [vmem:[#allocation7 + $0x378] sm:$0xff]
    %v186 = vld [vmem:[#allocation7 + $0x380] sm:$0xff]
    %v187 = vld [vmem:[#allocation7 + $0x388] sm:$0xff]
    %v188 = vld [vmem:[#allocation7 + $0x390] sm:$0xff]
    %v189 = vld [vmem:[#allocation7 + $0x398] sm:$0xff]
    %v190 = vld [vmem:[#allocation7 + $0x3a0] sm:$0xff]
    %v191 = vld [vmem:[#allocation7 + $0x3a8] sm:$0xff]
    %v192 = vld [vmem:[#allocation7 + $0x3b0] sm:$0xff]
    %v193 = vld [vmem:[#allocation7 + $0x3b8] sm:$0xff]
    %v194 = vld [vmem:[#allocation7 + $0x3c0] sm:$0xff]
    %v195 = vld [vmem:[#allocation7 + $0x3c8] sm:$0xff]
    %v196 = vld [vmem:[#allocation7 + $0x3d0] sm:$0xff]
    %v197 = vld [vmem:[#allocation7 + $0x3d8] sm:$0xff]
    %v198 = vld [vmem:[#allocation7 + $0x3e0] sm:$0xff]
    %v199 = vld [vmem:[#allocation7 + $0x3e8] sm:$0xff]
    %v200 = vld [vmem:[#allocation7 + $0x3f0] sm:$0xff]
    %v201 = vld [vmem:[#allocation7 + $0x3f8] sm:$0xff]
    %202 = vmatprep.subr.mxu0 %v75
    %203 = vmatpush1.msra.mxu0 %v74
    %204 = vmatprep.subr.mxu0 %v79
    %205 = vmatpush1.msra.mxu0 %v78
    %206 = vmatprep.subr.mxu0 %v83
    %207 = vmatpush1.msra.mxu0 %v82
    %208 = vmatprep.subr.mxu0 %v87
    %209 = vmatpush1.msra.mxu0 %v86
    %210 = vmatprep.subr.mxu0 %v91
    %211 = vmatpush1.msra.mxu0 %v90
    %212 = vmatprep.subr.mxu0 %v95
    %213 = vmatpush1.msra.mxu0 %v94
    %214 = vmatprep.subr.mxu0 %v99
    %215 = vmatpush1.msra.mxu0 %v98
    %216 = vmatprep.subr.mxu0 %v103
    %217 = vmatpush1.msra.mxu0 %v102
    %218 = vmatprep.subr.mxu0 %v107
    %219 = vmatpush1.msra.mxu0 %v106
    %220 = vmatprep.subr.mxu0 %v111
    %221 = vmatpush1.msra.mxu0 %v110
    %222 = vmatprep.subr.mxu0 %v115
    %223 = vmatpush1.msra.mxu0 %v114
    %224 = vmatprep.subr.mxu0 %v119
    %225 = vmatpush1.msra.mxu0 %v118
    %226 = vmatprep.subr.mxu0 %v123
    %227 = vmatpush1.msra.mxu0 %v122
    %228 = vmatprep.subr.mxu0 %v127
    %229 = vmatpush1.msra.mxu0 %v126
    %230 = vmatprep.subr.mxu0 %v131
    %231 = vmatpush1.msra.mxu0 %v130
    %232 = vmatprep.subr.mxu0 %v135
    %233 = vmatpush1.msra.mxu0 %v134
    %234 = vmatprep.subr.mxu0 %v139
    %235 = vmatpush1.msra.mxu0 %v138
    %236 = vmatprep.subr.mxu0 %v143
    %237 = vmatpush1.msra.mxu0 %v142
    %238 = vmatprep.subr.mxu0 %v147
    %239 = vmatpush1.msra.mxu0 %v146
    %240 = vmatprep.subr.mxu0 %v151
    %241 = vmatpush1.msra.mxu0 %v150
    %242 = vmatprep.subr.mxu0 %v155
    %243 = vmatpush1.msra.mxu0 %v154
    %244 = vmatprep.subr.mxu0 %v159
    %245 = vmatpush1.msra.mxu0 %v158
    %246 = vmatprep.subr.mxu0 %v163
    %247 = vmatpush1.msra.mxu0 %v162
    %248 = vmatprep.subr.mxu0 %v167
    %249 = vmatpush1.msra.mxu0 %v166
    %250 = vmatprep.subr.mxu0 %v171
    %251 = vmatpush1.msra.mxu0 %v170
    %252 = vmatprep.subr.mxu0 %v175
    %253 = vmatpush1.msra.mxu0 %v174
    %254 = vmatprep.subr.mxu0 %v179
    %255 = vmatpush1.msra.mxu0 %v178
    %256 = vmatprep.subr.mxu0 %v183
    %257 = vmatpush1.msra.mxu0 %v182
    %258 = vmatprep.subr.mxu0 %v187
    %259 = vmatpush1.msra.mxu0 %v186
    %260 = vmatprep.subr.mxu0 %v191
    %261 = vmatpush1.msra.mxu0 %v190
    %262 = vmatprep.subr.mxu0 %v195
    %263 = vmatpush1.msra.mxu0 %v194
    %264 = vmatprep.subr.mxu0 %v199
    %265 = vmatpush1.msra.mxu0 %v198
    %266 = vmatprep.mubr.f32.mxu0 %v70
    %267 = vmatmul.mubr.f32.gmra.mrb[0].mxu0 %v69
    %v268 = vpop.f32.mrb[0].mxu0
    %v269 = vadd.f32 0.0, %v268
    %v270 = vpop.f32.mrb[0].mxu0
    %v271 = vadd.f32 0.0, %v270
    %272 = vmatprep.mubr.f32.mxu0 %v73
    %273 = vmatmul.mubr.f32.gmra.mrb[0].mxu0 %v72
    %v274 = vpop.f32.mrb[0].mxu0
    %v275 = vadd.f32 0.0, %v274
    %v276 = vpop.f32.mrb[0].mxu0
    %v277 = vadd.f32 0.0, %v276
    %278 = vdwg.mxu0
    %279 = vmatprep.subr.mxu0 %v77
    %280 = vmatpush1.msra.mxu0 %v76
    %281 = vmatprep.subr.mxu0 %v81
    %282 = vmatpush1.msra.mxu0 %v80
    %283 = vmatprep.subr.mxu0 %v85
    %284 = vmatpush1.msra.mxu0 %v84
    %285 = vmatprep.subr.mxu0 %v89
    %286 = vmatpush1.msra.mxu0 %v88
    %287 = vmatprep.subr.mxu0 %v93
    %288 = vmatpush1.msra.mxu0 %v92
    %289 = vmatprep.subr.mxu0 %v97
    %290 = vmatpush1.msra.mxu0 %v96
    %291 = vmatprep.subr.mxu0 %v101
    %292 = vmatpush1.msra.mxu0 %v100
    %293 = vmatprep.subr.mxu0 %v105
    %294 = vmatpush1.msra.mxu0 %v104
    %295 = vmatprep.subr.mxu0 %v109
    %296 = vmatpush1.msra.mxu0 %v108
    %297 = vmatprep.subr.mxu0 %v113
    %298 = vmatpush1.msra.mxu0 %v112
    %299 = vmatprep.subr.mxu0 %v117
    %300 = vmatpush1.msra.mxu0 %v116
    %301 = vmatprep.subr.mxu0 %v121
    %302 = vmatpush1.msra.mxu0 %v120
    %303 = vmatprep.subr.mxu0 %v125
    %304 = vmatpush1.msra.mxu0 %v124
    %305 = vmatprep.subr.mxu0 %v129
    %306 = vmatpush1.msra.mxu0 %v128
    %307 = vmatprep.subr.mxu0 %v133
    %308 = vmatpush1.msra.mxu0 %v132
    %309 = vmatprep.subr.mxu0 %v137
    %310 = vmatpush1.msra.mxu0 %v136
    %311 = vmatprep.subr.mxu0 %v141
    %312 = vmatpush1.msra.mxu0 %v140
    %313 = vmatprep.subr.mxu0 %v145
    %314 = vmatpush1.msra.mxu0 %v144
    %315 = vmatprep.subr.mxu0 %v149
    %316 = vmatpush1.msra.mxu0 %v148
    %317 = vmatprep.subr.mxu0 %v153
    %318 = vmatpush1.msra.mxu0 %v152
    %319 = vmatprep.subr.mxu0 %v157
    %320 = vmatpush1.msra.mxu0 %v156
    %321 = vmatprep.subr.mxu0 %v161
    %322 = vmatpush1.msra.mxu0 %v160
    %323 = vmatprep.subr.mxu0 %v165
    %324 = vmatpush1.msra.mxu0 %v164
    %325 = vmatprep.subr.mxu0 %v169
    %326 = vmatpush1.msra.mxu0 %v168
    %327 = vmatprep.subr.mxu0 %v173
    %328 = vmatpush1.msra.mxu0 %v172
    %329 = vmatprep.subr.mxu0 %v177
    %330 = vmatpush1.msra.mxu0 %v176
    %331 = vmatprep.subr.mxu0 %v181
    %332 = vmatpush1.msra.mxu0 %v180
    %333 = vmatprep.subr.mxu0 %v185
    %334 = vmatpush1.msra.mxu0 %v184
    %335 = vmatprep.subr.mxu0 %v189
    %336 = vmatpush1.msra.mxu0 %v188
    %337 = vmatprep.subr.mxu0 %v193
    %338 = vmatpush1.msra.mxu0 %v192
    %339 = vmatprep.subr.mxu0 %v197
    %340 = vmatpush1.msra.mxu0 %v196
    %341 = vmatprep.subr.mxu0 %v201
    %342 = vmatpush1.msra.mxu0 %v200
    %343 = vmatprep.mubr.f32.mxu0 %v70
    %344 = vmatmul.mubr.f32.gmra.mrb[0].mxu0 %v69
    %v345 = vpop.f32.mrb[0].mxu0
    %v346 = vadd.f32 0.0, %v345
    %v347 = vpop.f32.mrb[0].mxu0
    %v348 = vadd.f32 0.0, %v347
    %349 = vmatprep.mubr.f32.mxu0 %v73
    %350 = vmatmul.mubr.f32.gmra.mrb[0].mxu0 %v72
    %v351 = vpop.f32.mrb[0].mxu0
    %v352 = vadd.f32 0.0, %v351
    %v353 = vpop.f32.mrb[0].mxu0
    %v354 = vadd.f32 0.0, %v353
    %355 = vdwg.mxu0
    %v356 = vand.u32 2147483647, %v269
    %v357 = vand.u32 2147483647, %v346
    %v358 = vmin.f32 %v356, %v357
    %v359 = vmax.f32 %v356, %v357
    %v360 = vrcp.pop %v359
    %v361 = vmul.f32 %v358, %v360
    %v362 = vmul.f32 %v361, %v361
    %v363 = vmul.f32 0.002785687, %v362
    %v364 = vadd.f32 %v363, -0.015866
    %v365 = vmul.f32 %v364, %v362
    %v366 = vadd.f32 %v365, 0.04247222
    %v367 = vmul.f32 %v366, %v362
    %v368 = vadd.f32 %v367, -0.074975304
    %v369 = vmul.f32 %v368, %v362
    %v370 = vadd.f32 %v369, 0.1064488
    %v371 = vmul.f32 %v370, %v362
    %v372 = vadd.f32 %v371, -0.14207031
    %v373 = vmul.f32 %v372, %v362
    %v374 = vadd.f32 %v373, 0.19993454
    %v375 = vmul.f32 %v374, %v362
    %v376 = vadd.f32 %v375, -0.33333147
    %v377 = vmul.f32 %v376, %v362
    %v378 = vmul.f32 %v377, %v361
    %v379 = vadd.f32 %v378, %v361
    %vm380 = vcmp.gt.f32.partialorder %v357, %v356
    %v381 = vsub.f32 1.5707964, %v379
    %v382 = vsel %vm380, %v381, %v379
    %vm383 = vcmp.lt.f32.partialorder %v269, 0.0
    %v384 = vsub.f32 3.1415927, %v382
    %v385 = vsel %vm383, %v384, %v382
    %vm386 = vcmp.lt.s32.totalorder %v269, 0
    %v387 = vsel %vm386, 3.1415927, 0.0
    %vm388 = vcmp.eq.f32.partialorder %v346, 0.0
    %v389 = vsel %vm388, %v387, %v385
    %vm390 = vcmp.ne.f32.partialorder %v269, %v269
    %vm391 = vcmp.ne.f32.partialorder %v346, %v346
    %vm392 = vmor %vm390, %vm391
    %v393 = vsel %vm392, nan, %v389
    %vm394 = vcmp.lt.f32.partialorder %v269, 0.0
    %v395 = vsel %vm394, 2.3561945, 0.7853982
    %vm396 = vcmp.eq.s32.totalorder %v356, inf
    %vm397 = vcmp.eq.s32.totalorder %v357, inf
    %vm398 = vmand %vm396, %vm397
    %v399 = vsel %vm398, %v395, %v393
    %v400 = vand.u32 2147483647, %v399
    %v401 = vand.u32 %v346, 2147483648
    %v402 = vor.u32 %v400, %v401
    %v403 = vand.u32 2147483647, %v271
    %v404 = vand.u32 2147483647, %v348
    %v405 = vmin.f32 %v403, %v404
    %v406 = vmax.f32 %v403, %v404
    %v407 = vrcp.pop %v406
    %v408 = vmul.f32 %v405, %v407
    %v409 = vmul.f32 %v408, %v408
    %v410 = vmul.f32 0.002785687, %v409
    %v411 = vadd.f32 %v410, -0.015866
    %v412 = vmul.f32 %v411, %v409
    %v413 = vadd.f32 %v412, 0.04247222
    %v414 = vmul.f32 %v413, %v409
    %v415 = vadd.f32 %v414, -0.074975304
    %v416 = vmul.f32 %v415, %v409
    %v417 = vadd.f32 %v416, 0.1064488
    %v418 = vmul.f32 %v417, %v409
    %v419 = vadd.f32 %v418, -0.14207031
    %v420 = vmul.f32 %v419, %v409
    %v421 = vadd.f32 %v420, 0.19993454
    %v422 = vmul.f32 %v421, %v409
    %v423 = vadd.f32 %v422, -0.33333147
    %v424 = vmul.f32 %v423, %v409
    %v425 = vmul.f32 %v424, %v408
    %v426 = vadd.f32 %v425, %v408
    %vm427 = vcmp.gt.f32.partialorder %v404, %v403
    %v428 = vsub.f32 1.5707964, %v426
    %v429 = vsel %vm427, %v428, %v426
    %vm430 = vcmp.lt.f32.partialorder %v271, 0.0
    %v431 = vsub.f32 3.1415927, %v429
    %v432 = vsel %vm430, %v431, %v429
    %vm433 = vcmp.lt.s32.totalorder %v271, 0
    %v434 = vsel %vm433, 3.1415927, 0.0
    %vm435 = vcmp.eq.f32.partialorder %v348, 0.0
    %v436 = vsel %vm435, %v434, %v432
    %vm437 = vcmp.ne.f32.partialorder %v271, %v271
    %vm438 = vcmp.ne.f32.partialorder %v348, %v348
    %vm439 = vmor %vm437, %vm438
    %v440 = vsel %vm439, nan, %v436
    %vm441 = vcmp.lt.f32.partialorder %v271, 0.0
    %v442 = vsel %vm441, 2.3561945, 0.7853982
    %vm443 = vcmp.eq.s32.totalorder %v403, inf
    %vm444 = vcmp.eq.s32.totalorder %v404, inf
    %vm445 = vmand %vm443, %vm444
    %v446 = vsel %vm445, %v442, %v440
    %v447 = vand.u32 2147483647, %v446
    %v448 = vand.u32 %v348, 2147483648
    %v449 = vor.u32 %v447, %v448
    %v450 = vand.u32 2147483647, %v275
    %v451 = vand.u32 2147483647, %v352
    %v452 = vmin.f32 %v450, %v451
    %v453 = vmax.f32 %v450, %v451
    %v454 = vrcp.pop %v453
    %v455 = vmul.f32 %v452, %v454
    %v456 = vmul.f32 %v455, %v455
    %v457 = vmul.f32 0.002785687, %v456
    %v458 = vadd.f32 %v457, -0.015866
    %v459 = vmul.f32 %v458, %v456
    %v460 = vadd.f32 %v459, 0.04247222
    %v461 = vmul.f32 %v460, %v456
    %v462 = vadd.f32 %v461, -0.074975304
    %v463 = vmul.f32 %v462, %v456
    %v464 = vadd.f32 %v463, 0.1064488
    %v465 = vmul.f32 %v464, %v456
    %v466 = vadd.f32 %v465, -0.14207031
    %v467 = vmul.f32 %v466, %v456
    %v468 = vadd.f32 %v467, 0.19993454
    %v469 = vmul.f32 %v468, %v456
    %v470 = vadd.f32 %v469, -0.33333147
    %v471 = vmul.f32 %v470, %v456
    %v472 = vmul.f32 %v471, %v455
    %v473 = vadd.f32 %v472, %v455
    %vm474 = vcmp.gt.f32.partialorder %v451, %v450
    %v475 = vsub.f32 1.5707964, %v473
    %v476 = vsel %vm474, %v475, %v473
    %vm477 = vcmp.lt.f32.partialorder %v275, 0.0
    %v478 = vsub.f32 3.1415927, %v476
    %v479 = vsel %vm477, %v478, %v476
    %vm480 = vcmp.lt.s32.totalorder %v275, 0
    %v481 = vsel %vm480, 3.1415927, 0.0
    %vm482 = vcmp.eq.f32.partialorder %v352, 0.0
    %v483 = vsel %vm482, %v481, %v479
    %vm484 = vcmp.ne.f32.partialorder %v275, %v275
    %vm485 = vcmp.ne.f32.partialorder %v352, %v352
    %vm486 = vmor %vm484, %vm485
    %v487 = vsel %vm486, nan, %v483
    %vm488 = vcmp.lt.f32.partialorder %v275, 0.0
    %v489 = vsel %vm488, 2.3561945, 0.7853982
    %vm490 = vcmp.eq.s32.totalorder %v450, inf
    %vm491 = vcmp.eq.s32.totalorder %v451, inf
    %vm492 = vmand %vm490, %vm491
    %v493 = vsel %vm492, %v489, %v487
    %v494 = vand.u32 2147483647, %v493
    %v495 = vand.u32 %v352, 2147483648
    %v496 = vor.u32 %v494, %v495
    %v497 = vand.u32 2147483647, %v277
    %v498 = vand.u32 2147483647, %v354
    %v499 = vmin.f32 %v497, %v498
    %v500 = vmax.f32 %v497, %v498
    %v501 = vrcp.pop %v500
    %v502 = vmul.f32 %v499, %v501
    %v503 = vmul.f32 %v502, %v502
    %v504 = vmul.f32 0.002785687, %v503
    %v505 = vadd.f32 %v504, -0.015866
    %v506 = vmul.f32 %v505, %v503
    %v507 = vadd.f32 %v506, 0.04247222
    %v508 = vmul.f32 %v507, %v503
    %v509 = vadd.f32 %v508, -0.074975304
    %v510 = vmul.f32 %v509, %v503
    %v511 = vadd.f32 %v510, 0.1064488
    %v512 = vmul.f32 %v511, %v503
    %v513 = vadd.f32 %v512, -0.14207031
    %v514 = vmul.f32 %v513, %v503
    %v515 = vadd.f32 %v514, 0.19993454
    %v516 = vmul.f32 %v515, %v503
    %v517 = vadd.f32 %v516, -0.33333147
    %v518 = vmul.f32 %v517, %v503
    %v519 = vmul.f32 %v518, %v502
    %v520 = vadd.f32 %v519, %v502
    %vm521 = vcmp.gt.f32.partialorder %v498, %v497
    %v522 = vsub.f32 1.5707964, %v520
    %v523 = vsel %vm521, %v522, %v520
    %vm524 = vcmp.lt.f32.partialorder %v277, 0.0
    %v525 = vsub.f32 3.1415927, %v523
    %v526 = vsel %vm524, %v525, %v523
    %vm527 = vcmp.lt.s32.totalorder %v277, 0
    %v528 = vsel %vm527, 3.1415927, 0.0
    %vm529 = vcmp.eq.f32.partialorder %v354, 0.0
    %v530 = vsel %vm529, %v528, %v526
    %vm531 = vcmp.ne.f32.partialorder %v277, %v277
    %vm532 = vcmp.ne.f32.partialorder %v354, %v354
    %vm533 = vmor %vm531, %vm532
    %v534 = vsel %vm533, nan, %v530
    %vm535 = vcmp.lt.f32.partialorder %v277, 0.0
    %v536 = vsel %vm535, 2.3561945, 0.7853982
    %vm537 = vcmp.eq.s32.totalorder %v497, inf
    %vm538 = vcmp.eq.s32.totalorder %v498, inf
    %vm539 = vmand %vm537, %vm538
    %v540 = vsel %vm539, %v536, %v534
    %v541 = vand.u32 2147483647, %v540
    %v542 = vand.u32 %v354, 2147483648
    %v543 = vor.u32 %v541, %v542
    %v544 = vsub.f32 %v402, %v496
    %v545 = vsub.f32 %v449, %v543
    %v546 = vmul.f32 %v544, %v544
    %v547 = vmul.f32 %v545, %v545
    %v548 = vld [vmem:[#allocation8] sm:$0xff]
    %v549 = vld [vmem:[#allocation8 + $0x8] sm:$0xff]
    %v550 = vadd.f32 %v548, %v546
    %v551 = vadd.f32 %v549, %v547
    %552 = vst [vmem:[#allocation8] sm:$0xff] %v550
    %553 = vst [vmem:[#allocation8 + $0x8] sm:$0xff] %v551
    // Predicated region
    $region30: #{tpu_custom_call.1} parent=1 // pred_check
      _
    $region31: #{tpu_custom_call.1} parent=1 // pred_check_branch
      %555 = sbr.rel (0) target = $region33
    $region32: #{tpu_custom_call.1} parent=1 // pred_region
      %s557 = ssub.s32 256, 256
      %558 = vsyncadd [#allocation4], %s557
      %s560 = sshll.u32 [#allocation8], 4
      %s561 = int_to_ptr.vmem [resolvable:$true] %s560
      %563 = dma.vmem_to_hbm [thread:$0]  %s561, 256, %s3, [#allocation4]
    $region33: #{tpu_custom_call.1} parent=1 // pred_fallthru
      _
    // Predicated region
    $region34: #{tpu_custom_call.1} parent=1 // pred_check
      _
    $region35: #{tpu_custom_call.1} parent=1 // pred_check_branch
      %565 = sbr.rel (0) target = $region37
    $region36: #{tpu_custom_call.1} parent=1 // pred_region
      %566 = dma.done [#allocation4], 256
    $region37: #{tpu_custom_call.1} parent=1 // pred_fallthru
      _
    %567 = vsyncpa [#allocation3], 1
    %568 = vsyncpa [#allocation6], 1
    %569 = vsyncpa [#allocation4], 1

</llo_original>
